<compile_context>
chip_gen: v5e
topology: v5e:2x2
jax: 0.10.0
libtpu: 0.0.40
codegen_flags: <defaults>
</compile_context>

<pallas_src>
import math
import functools

import jax
import jax.numpy as jnp
from jax.experimental import pallas as pl
from jax.experimental.pallas import tpu as pltpu


K_CHUNK = 128   # lane width of each multi-hot / lookup chunk


# ----------------------------- helpers (glue) --------------------------------

def sinusoidal_table(n, d_model):
    """FixedEmbedding / PositionalEmbedding table of shape (n, d_model)."""
    position = jnp.arange(n, dtype=jnp.float32)[:, None]                     # (n, 1)
    div_term = jnp.exp(jnp.arange(0, d_model, 2, dtype=jnp.float32)
                       * -(math.log(10000.0) / d_model))                     # (d_model/2,)
    ang = position * div_term                                                # (n, d_model/2)
    tab = jnp.zeros((n, d_model), dtype=jnp.float32)
    tab = tab.at[:, 0::2].set(jnp.sin(ang))
    tab = tab.at[:, 1::2].set(jnp.cos(ang))
    return tab


def pick_tb(B, L, row_bytes, vmem_budget=8 << 20):
    """Batch-block size.

    Prefer >= 2 grid steps (so both v7x TensorCores get work) and 8-aligned
    rows, while keeping the double-buffered per-step streamed footprint under
    a budget that is safe on every generation.  Falls back to a single full
    block (no alignment constraint) if nothing else divides B.
    """
    divisors = [tb for tb in range(B, 0, -1) if B % tb == 0]

    def fits(tb):
        return 2 * tb * L * row_bytes <= vmem_budget

    for tb in divisors:                           # largest tb with >= 2 steps
        if B // tb >= 2 and (tb * L) % 8 == 0 and fits(tb):
            return tb
    for tb in divisors:                           # largest aligned tb that fits
        if (tb * L) % 8 == 0 and fits(tb):
            return tb
    return B                                      # single step: block == full array


# ------------------------------- Pallas kernel --------------------------------

def data_embedding_kernel(xwin_ref, idx_ref, pe_ref, nat_ref, wconv_ref,
                          table_ref, out_ref, *, tb, k_chunk):
    # Per grid step (TB batch elements, flattened over the sequence):
    #   xwin_ref : (TB*L, 3*c_in)    bf16  im2col'd circularly padded values
    #   idx_ref  : (TB*L, 4)         int32 offset temporal indices
    #   pe_ref   : (L, d_model)      f32   positional table         (invariant)
    #   nat_ref  : (TB, d_model)     f32   per-batch geo rows
    #   wconv_ref: (3*c_in, d_model) bf16  fused conv weight        (invariant)
    #   table_ref: (K_pad, d_model)  bf16  fused temporal table     (invariant)
    #   out_ref  : (TB, L, d_model)  out_dtype
    rows = xwin_ref.shape[0]
    L, d_model = pe_ref.shape
    k_pad = table_ref.shape[0]

    # --- TokenEmbedding: single fused im2col matmul (MXU, f32 accumulate) ---
    acc = jnp.dot(xwin_ref[...], wconv_ref[...],
                  preferred_element_type=jnp.float32)            # (rows, d_model)

    # --- TemporalEmbedding: chunked multi-hot @ table (bool build, 1 cast) ---
    idx = idx_ref[...]                                           # (rows, 4)
    cols = [idx[:, j:j + 1] for j in range(idx.shape[1])]        # hoisted slices
    lane = jax.lax.broadcasted_iota(jnp.int32, (rows, k_chunk), 1)  # hoisted iota
    for start in range(0, k_pad, k_chunk):                       # static unroll
        hot = lane == (cols[0] - start)
        for col in cols[1:]:
            hot = hot | (lane == (col - start))                  # ranges disjoint
        acc = acc + jnp.dot(hot.astype(table_ref.dtype),         # bool -> bf16 once
                            table_ref[start:start + k_chunk, :],
                            preferred_element_type=jnp.float32)

    # --- Positional + Geo embeddings: broadcast adds in f32 on a 3-D view ---
    acc = acc.reshape(tb, L, d_model)
    acc = acc + pe_ref[...][None, :, :] + nat_ref[...][:, None, :]
    out_ref[...] = acc.astype(out_ref.dtype)


# ------------------------------- wrapper --------------------------------------

def data_embedding_forward(x, x_mark, params, *, node_num, sizes,
                           out_dtype=jnp.float32):
    """x: (B, L, c_in) float32, x_mark: (B, L, len(sizes)) float32."""
    B, L, c_in = x.shape
    d_model = params["w_conv"].shape[2]
    n_time = x_mark.shape[-1]
    assert n_time == len(sizes)

    # streamed bytes per row of a block: x window (bf16) + idx + acc/out
    row_bytes = (3 * c_in * 2 + n_time * 4 + d_model * 4
                 + d_model * jnp.dtype(out_dtype).itemsize)
    tb = pick_tb(B, L, row_bytes)
    grid = (B // tb,)

    # ----- glue: circular pad + im2col -> (B*L, 3*c_in), bf16 -----
    x_pad = jnp.concatenate([x[:, -1:, :], x, x[:, :1, :]], axis=1)      # (B, L+2, c_in)
    x_win = jnp.concatenate(
        [x_pad[:, 0:L, :], x_pad[:, 1:L + 1, :], x_pad[:, 2:L + 2, :]], axis=-1)
    x_win = x_win.reshape(B * L, 3 * c_in).astype(jnp.bfloat16)

    # fused conv weight (3, c_in, d_model) -> (3*c_in, d_model), bf16
    w_fused = params["w_conv"].reshape(3 * c_in, d_model).astype(jnp.bfloat16)

    # ----- glue: temporal indices + fused table from ONE shared (size, table) list -----
    tables = params["temporal_tables"]
    assert len(tables) == len(sizes)
    for tbl, s in zip(tables, sizes):
        assert tbl.shape[0] == s and tbl.shape[1] == d_model

    sz_f = jnp.array(sizes, dtype=jnp.float32)
    sz_i = jnp.array(sizes, dtype=jnp.int32)
    idx = ((x_mark + 0.5) * sz_f[None, None, :]).astype(jnp.int32)        # trunc toward 0
    idx = jnp.clip(idx, 0, sz_i[None, None, :] - 1)                       # (B, L, 4)
    offs, o = [], 0
    for s in sizes:
        offs.append(o)
        o += s
    idx_full = (idx + jnp.array(offs, dtype=jnp.int32)[None, None, :]
                ).reshape(B * L, n_time)

    k_raw = o
    k_pad = -(-k_raw // K_CHUNK) * K_CHUNK
    table = jnp.concatenate(list(tables), axis=0)
    table = jnp.concatenate(
        [table, jnp.zeros((k_pad - k_raw, d_model), jnp.float32)], axis=0)
    table = table.astype(jnp.bfloat16)                                    # (K_pad, d_model)

    # ----- glue: geo rows pulled out of the one-hot (kept in f32) -----
    nat_emb = (params["national_position"] @ params["w_geo"]
               + params["b_geo"])                                         # (node_num, d_model)
    nat_b = nat_emb[jnp.arange(B, dtype=jnp.int32) % node_num]            # (B, d_model)
    nat_b = nat_b.reshape(B // tb, tb, d_model).astype(jnp.float32)

    pe = params["pe_table"][:L].astype(jnp.float32)                       # (L, d_model)

    kernel = functools.partial(data_embedding_kernel, tb=tb, k_chunk=K_CHUNK)

    out = pl.pallas_call(
        kernel,
        out_shape=jax.ShapeDtypeStruct((B, L, d_model), out_dtype),
        grid_spec=pltpu.PrefetchScalarGridSpec(
            num_scalar_prefetch=0,
            grid=grid,
            in_specs=[
                pl.BlockSpec((tb * L, 3 * c_in), lambda i: (i, 0)),       # x windows
                pl.BlockSpec((tb * L, n_time), lambda i: (i, 0)),         # temporal idx
                pl.BlockSpec((L, d_model), lambda i: (0, 0)),             # pe (invariant)
                pl.BlockSpec((None, tb, d_model), lambda i: (i, 0, 0)),   # geo rows per block
                pl.BlockSpec((3 * c_in, d_model), lambda i: (0, 0)),      # conv w (invariant)
                pl.BlockSpec((k_pad, d_model), lambda i: (0, 0)),         # fused table (invariant)
            ],
            out_specs=pl.BlockSpec((tb, L, d_model), lambda i: (i, 0, 0)),
        ),
        compiler_params=pltpu.CompilerParams(
            dimension_semantics=("parallel",)),
    )(x_win, idx_full, pe, nat_b, w_fused, table)

    return out


# ------------------------------- reference ------------------------------------

def data_embedding_reference(x, x_mark, params, *, node_num, sizes):
    """Independent reference mirroring the PyTorch module, with the same bf16
    quantization points as the kernel (conv operands and temporal tables in
    bf16 with f32 accumulation; pe and geo stay f32)."""
    B, L, c_in = x.shape

    # TokenEmbedding: circular Conv1d(k=3) as 3 shifted matmuls
    x_pad = jnp.concatenate([x[:, -1:, :], x, x[:, :1, :]], axis=1)
    val = sum(jnp.einsum('blc,cd->bld',
                         x_pad[:, k:k + L, :].astype(jnp.bfloat16),
                         params["w_conv"][k].astype(jnp.bfloat16),
                         preferred_element_type=jnp.float32)
              for k in range(3))

    # PositionalEmbedding
    pe = params["pe_table"][:L][None]

    # TemporalEmbedding (fixed): direct gathers from bf16 tables
    sz_f = jnp.array(sizes, dtype=jnp.float32)
    sz_i = jnp.array(sizes, dtype=jnp.int32)
    idx = ((x_mark + 0.5) * sz_f[None, None, :]).astype(jnp.int32)
    idx = jnp.clip(idx, 0, sz_i[None, None, :] - 1)
    temp = sum(tbl.astype(jnp.bfloat16)[idx[:, :, j]].astype(jnp.float32)
               for j, tbl in enumerate(params["temporal_tables"]))

    # GeoPositionalEmbedding (f32, same as the kernel's pulled-out geo path)
    nat_emb = params["national_position"] @ params["w_geo"] + params["b_geo"]
    nat = nat_emb[jnp.arange(B) % node_num][:, None, :]                   # (B, 1, d_model)

    return val + pe + temp + nat


# --------------------------------- main ----------------------------------------

if __name__ == "__main__":
    # Small, consistent shapes
    node_num = 2
    variable_num = 4
    B = 4            # multiple of node_num
    L = 8
    c_in = 4
    d_model = 32
    c_geo = 3 * (variable_num // node_num)   # = 6
    sizes = (24, 7, 32, 366)                 # time_of_day, day_of_week, day_of_month, day_of_year

    key = jax.random.PRNGKey(0)
    k_x, k_mark, k_conv, k_geo_w, k_geo_b, k_nat = jax.random.split(key, 6)

    # Inputs
    x = jax.random.normal(k_x, (B, L, c_in), dtype=jnp.float32)
    # x_mark in [-0.5, 0.5) so (x+0.5)*size truncates to a valid index
    x_mark = jax.random.uniform(k_mark, (B, L, 4), dtype=jnp.float32,
                                minval=-0.5, maxval=0.4999)

    # Parameters (deterministic synthetic init, matching module shapes)
    # Conv1d weight (d_model, c_in, 3), kaiming_normal fan_in, leaky_relu gain
    fan_in = c_in * 3
    gain = math.sqrt(2.0 / (1.0 + 0.01 ** 2))
    w_conv_torch = jax.random.normal(k_conv, (d_model, c_in, 3),
                                     dtype=jnp.float32) * (gain / math.sqrt(fan_in))
    # repack for seq-major matmul: w_conv[k] = W[:, :, k].T  -> (3, c_in, d_model)
    w_conv = jnp.transpose(w_conv_torch, (2, 1, 0))

    # GeoPositionalEmbedding: Linear(c_geo, d_model)
    bound = 1.0 / math.sqrt(c_geo)
    w_geo = jax.random.uniform(k_geo_w, (c_geo, d_model), dtype=jnp.float32,
                               minval=-bound, maxval=bound)       # already W.T layout
    b_geo = jax.random.uniform(k_geo_b, (1, d_model), dtype=jnp.float32,
                               minval=-bound, maxval=bound)

    # national_position: xavier_uniform over (node_num, c_geo)
    xav = math.sqrt(6.0 / (node_num + c_geo))
    national_position = jax.random.uniform(k_nat, (node_num, c_geo),
                                           dtype=jnp.float32,
                                           minval=-xav, maxval=xav)

    params = {
        "w_conv": w_conv,
        "w_geo": w_geo,
        "b_geo": b_geo,
        "national_position": national_position,
        "pe_table": sinusoidal_table(L, d_model),
        "temporal_tables": tuple(sinusoidal_table(s, d_model) for s in sizes),
    }

    out = data_embedding_forward(x, x_mark, params, node_num=node_num, sizes=sizes)
    out = jax.block_until_ready(out)

    ref = data_embedding_reference(x, x_mark, params, node_num=node_num, sizes=sizes)
    ref = jax.block_until_ready(ref)

    assert out.shape == (B, L, d_model)
    assert jnp.allclose(out, ref, rtol=1e-3, atol=1e-3), \
        f"max abs err {jnp.max(jnp.abs(out - ref))}"

    print("KERNEL_OK")
</pallas_src>

<mosaic_0001>
module attributes {stable_mosaic.version = 11 : i64} {
  func.func @data_embedding_kernel(%arg0: i32, %arg1: memref<16x12xbf16, #tpu.memory_space<vmem>>, %arg2: memref<16x4xi32, #tpu.memory_space<vmem>>, %arg3: memref<8x32xf32, #tpu.memory_space<vmem>>, %arg4: memref<1x2x32xf32, #tpu.memory_space<vmem>>, %arg5: memref<12x32xbf16, #tpu.memory_space<vmem>>, %arg6: memref<512x32xbf16, #tpu.memory_space<vmem>>, %arg7: memref<2x8x32xf32, #tpu.memory_space<vmem>>) attributes {dimension_semantics = [#tpu.dimension_semantics<parallel>], iteration_bounds = array<i64: 2>, scalar_prefetch = 0 : i64, scratch_operands = 0 : i64, tpu.core_type = #tpu.core_type<tc>, window_params = [{transform_indices = @transform_0, window_bounds = array<i64: 16, 12>}, {transform_indices = @transform_1, window_bounds = array<i64: 16, 4>}, {pipeline_mode = #tpu.pipeline_mode<synchronous>, transform_indices = @transform_2, window_bounds = array<i64: 8, 32>}, {transform_indices = @transform_3, window_bounds = array<i64: 1, 2, 32>}, {pipeline_mode = #tpu.pipeline_mode<synchronous>, transform_indices = @transform_4, window_bounds = array<i64: 12, 32>}, {pipeline_mode = #tpu.pipeline_mode<synchronous>, transform_indices = @transform_5, window_bounds = array<i64: 512, 32>}, {transform_indices = @transform_6, window_bounds = array<i64: 2, 8, 32>}]} {
    %c0 = arith.constant 0 : index
    %c0_0 = arith.constant 0 : index
    %0 = vector.load %arg1[%c0, %c0_0] : memref<16x12xbf16, #tpu.memory_space<vmem>>, vector<16x12xbf16>
    %c0_1 = arith.constant 0 : index
    %c0_2 = arith.constant 0 : index
    %1 = vector.load %arg5[%c0_1, %c0_2] : memref<12x32xbf16, #tpu.memory_space<vmem>>, vector<12x32xbf16>
    %cst = arith.constant dense<0.000000e+00> : vector<16x32xf32>
    %2 = tpu.matmul %0, %1, %cst {dimension_numbers = #tpu.dot_dimension_numbers<[1], [0], [0], [1], [0, 0, 1, 1], [], []>} : vector<16x12xbf16>, vector<12x32xbf16>, vector<16x32xf32> -> vector<16x32xf32>
    %c0_3 = arith.constant 0 : index
    %c0_4 = arith.constant 0 : index
    %3 = vector.load %arg2[%c0_3, %c0_4] : memref<16x4xi32, #tpu.memory_space<vmem>>, vector<16x4xi32>
    %4 = vector.extract_strided_slice %3 {offsets = [0, 0], sizes = [16, 1], strides = [1, 1]} : vector<16x4xi32> to vector<16x1xi32>
    %5 = vector.extract_strided_slice %3 {offsets = [0, 1], sizes = [16, 1], strides = [1, 1]} : vector<16x4xi32> to vector<16x1xi32>
    %6 = vector.extract_strided_slice %3 {offsets = [0, 2], sizes = [16, 1], strides = [1, 1]} : vector<16x4xi32> to vector<16x1xi32>
    %7 = vector.extract_strided_slice %3 {offsets = [0, 3], sizes = [16, 1], strides = [1, 1]} : vector<16x4xi32> to vector<16x1xi32>
    %8 = tpu.iota {dimensions = array<i32: 1>} : vector<16x128xi32>
    %c0_i32 = arith.constant 0 : i32
    %9 = vector.broadcast %c0_i32 : i32 to vector<16x1xi32>
    %10 = arith.subi %4, %9 : vector<16x1xi32>
    %11 = vector.broadcast %10 : vector<16x1xi32> to vector<16x128xi32>
    %12 = arith.cmpi eq, %8, %11 : vector<16x128xi32>
    %c0_i32_5 = arith.constant 0 : i32
    %13 = vector.broadcast %c0_i32_5 : i32 to vector<16x1xi32>
    %14 = arith.subi %5, %13 : vector<16x1xi32>
    %15 = vector.broadcast %14 : vector<16x1xi32> to vector<16x128xi32>
    %16 = arith.cmpi eq, %8, %15 : vector<16x128xi32>
    %17 = arith.ori %12, %16 : vector<16x128xi1>
    %c0_i32_6 = arith.constant 0 : i32
    %18 = vector.broadcast %c0_i32_6 : i32 to vector<16x1xi32>
    %19 = arith.subi %6, %18 : vector<16x1xi32>
    %20 = vector.broadcast %19 : vector<16x1xi32> to vector<16x128xi32>
    %21 = arith.cmpi eq, %8, %20 : vector<16x128xi32>
    %22 = arith.ori %17, %21 : vector<16x128xi1>
    %c0_i32_7 = arith.constant 0 : i32
    %23 = vector.broadcast %c0_i32_7 : i32 to vector<16x1xi32>
    %24 = arith.subi %7, %23 : vector<16x1xi32>
    %25 = vector.broadcast %24 : vector<16x1xi32> to vector<16x128xi32>
    %26 = arith.cmpi eq, %8, %25 : vector<16x128xi32>
    %27 = arith.ori %22, %26 : vector<16x128xi1>
    %28 = arith.extui %27 : vector<16x128xi1> to vector<16x128xi32>
    %29 = arith.sitofp %28 : vector<16x128xi32> to vector<16x128xf32>
    %30 = arith.truncf %29 : vector<16x128xf32> to vector<16x128xbf16>
    %c0_8 = arith.constant 0 : index
    %c0_9 = arith.constant 0 : index
    %31 = vector.load %arg6[%c0_8, %c0_9] : memref<512x32xbf16, #tpu.memory_space<vmem>>, vector<128x32xbf16>
    %cst_10 = arith.constant dense<0.000000e+00> : vector<16x32xf32>
    %32 = tpu.matmul %30, %31, %cst_10 {dimension_numbers = #tpu.dot_dimension_numbers<[1], [0], [0], [1], [0, 0, 1, 1], [], []>} : vector<16x128xbf16>, vector<128x32xbf16>, vector<16x32xf32> -> vector<16x32xf32>
    %33 = arith.addf %2, %32 : vector<16x32xf32>
    %c128_i32 = arith.constant 128 : i32
    %34 = vector.broadcast %c128_i32 : i32 to vector<16x1xi32>
    %35 = arith.subi %4, %34 : vector<16x1xi32>
    %36 = vector.broadcast %35 : vector<16x1xi32> to vector<16x128xi32>
    %37 = arith.cmpi eq, %8, %36 : vector<16x128xi32>
    %c128_i32_11 = arith.constant 128 : i32
    %38 = vector.broadcast %c128_i32_11 : i32 to vector<16x1xi32>
    %39 = arith.subi %5, %38 : vector<16x1xi32>
    %40 = vector.broadcast %39 : vector<16x1xi32> to vector<16x128xi32>
    %41 = arith.cmpi eq, %8, %40 : vector<16x128xi32>
    %42 = arith.ori %37, %41 : vector<16x128xi1>
    %c128_i32_12 = arith.constant 128 : i32
    %43 = vector.broadcast %c128_i32_12 : i32 to vector<16x1xi32>
    %44 = arith.subi %6, %43 : vector<16x1xi32>
    %45 = vector.broadcast %44 : vector<16x1xi32> to vector<16x128xi32>
    %46 = arith.cmpi eq, %8, %45 : vector<16x128xi32>
    %47 = arith.ori %42, %46 : vector<16x128xi1>
    %c128_i32_13 = arith.constant 128 : i32
    %48 = vector.broadcast %c128_i32_13 : i32 to vector<16x1xi32>
    %49 = arith.subi %7, %48 : vector<16x1xi32>
    %50 = vector.broadcast %49 : vector<16x1xi32> to vector<16x128xi32>
    %51 = arith.cmpi eq, %8, %50 : vector<16x128xi32>
    %52 = arith.ori %47, %51 : vector<16x128xi1>
    %53 = arith.extui %52 : vector<16x128xi1> to vector<16x128xi32>
    %54 = arith.sitofp %53 : vector<16x128xi32> to vector<16x128xf32>
    %55 = arith.truncf %54 : vector<16x128xf32> to vector<16x128xbf16>
    %c128 = arith.constant 128 : index
    %c0_14 = arith.constant 0 : index
    %56 = vector.load %arg6[%c128, %c0_14] : memref<512x32xbf16, #tpu.memory_space<vmem>>, vector<128x32xbf16>
    %cst_15 = arith.constant dense<0.000000e+00> : vector<16x32xf32>
    %57 = tpu.matmul %55, %56, %cst_15 {dimension_numbers = #tpu.dot_dimension_numbers<[1], [0], [0], [1], [0, 0, 1, 1], [], []>} : vector<16x128xbf16>, vector<128x32xbf16>, vector<16x32xf32> -> vector<16x32xf32>
    %58 = arith.addf %33, %57 : vector<16x32xf32>
    %c256_i32 = arith.constant 256 : i32
    %59 = vector.broadcast %c256_i32 : i32 to vector<16x1xi32>
    %60 = arith.subi %4, %59 : vector<16x1xi32>
    %61 = vector.broadcast %60 : vector<16x1xi32> to vector<16x128xi32>
    %62 = arith.cmpi eq, %8, %61 : vector<16x128xi32>
    %c256_i32_16 = arith.constant 256 : i32
    %63 = vector.broadcast %c256_i32_16 : i32 to vector<16x1xi32>
    %64 = arith.subi %5, %63 : vector<16x1xi32>
    %65 = vector.broadcast %64 : vector<16x1xi32> to vector<16x128xi32>
    %66 = arith.cmpi eq, %8, %65 : vector<16x128xi32>
    %67 = arith.ori %62, %66 : vector<16x128xi1>
    %c256_i32_17 = arith.constant 256 : i32
    %68 = vector.broadcast %c256_i32_17 : i32 to vector<16x1xi32>
    %69 = arith.subi %6, %68 : vector<16x1xi32>
    %70 = vector.broadcast %69 : vector<16x1xi32> to vector<16x128xi32>
    %71 = arith.cmpi eq, %8, %70 : vector<16x128xi32>
    %72 = arith.ori %67, %71 : vector<16x128xi1>
    %c256_i32_18 = arith.constant 256 : i32
    %73 = vector.broadcast %c256_i32_18 : i32 to vector<16x1xi32>
    %74 = arith.subi %7, %73 : vector<16x1xi32>
    %75 = vector.broadcast %74 : vector<16x1xi32> to vector<16x128xi32>
    %76 = arith.cmpi eq, %8, %75 : vector<16x128xi32>
    %77 = arith.ori %72, %76 : vector<16x128xi1>
    %78 = arith.extui %77 : vector<16x128xi1> to vector<16x128xi32>
    %79 = arith.sitofp %78 : vector<16x128xi32> to vector<16x128xf32>
    %80 = arith.truncf %79 : vector<16x128xf32> to vector<16x128xbf16>
    %c256 = arith.constant 256 : index
    %c0_19 = arith.constant 0 : index
    %81 = vector.load %arg6[%c256, %c0_19] : memref<512x32xbf16, #tpu.memory_space<vmem>>, vector<128x32xbf16>
    %cst_20 = arith.constant dense<0.000000e+00> : vector<16x32xf32>
    %82 = tpu.matmul %80, %81, %cst_20 {dimension_numbers = #tpu.dot_dimension_numbers<[1], [0], [0], [1], [0, 0, 1, 1], [], []>} : vector<16x128xbf16>, vector<128x32xbf16>, vector<16x32xf32> -> vector<16x32xf32>
    %83 = arith.addf %58, %82 : vector<16x32xf32>
    %c384_i32 = arith.constant 384 : i32
    %84 = vector.broadcast %c384_i32 : i32 to vector<16x1xi32>
    %85 = arith.subi %4, %84 : vector<16x1xi32>
    %86 = vector.broadcast %85 : vector<16x1xi32> to vector<16x128xi32>
    %87 = arith.cmpi eq, %8, %86 : vector<16x128xi32>
    %c384_i32_21 = arith.constant 384 : i32
    %88 = vector.broadcast %c384_i32_21 : i32 to vector<16x1xi32>
    %89 = arith.subi %5, %88 : vector<16x1xi32>
    %90 = vector.broadcast %89 : vector<16x1xi32> to vector<16x128xi32>
    %91 = arith.cmpi eq, %8, %90 : vector<16x128xi32>
    %92 = arith.ori %87, %91 : vector<16x128xi1>
    %c384_i32_22 = arith.constant 384 : i32
    %93 = vector.broadcast %c384_i32_22 : i32 to vector<16x1xi32>
    %94 = arith.subi %6, %93 : vector<16x1xi32>
    %95 = vector.broadcast %94 : vector<16x1xi32> to vector<16x128xi32>
    %96 = arith.cmpi eq, %8, %95 : vector<16x128xi32>
    %97 = arith.ori %92, %96 : vector<16x128xi1>
    %c384_i32_23 = arith.constant 384 : i32
    %98 = vector.broadcast %c384_i32_23 : i32 to vector<16x1xi32>
    %99 = arith.subi %7, %98 : vector<16x1xi32>
    %100 = vector.broadcast %99 : vector<16x1xi32> to vector<16x128xi32>
    %101 = arith.cmpi eq, %8, %100 : vector<16x128xi32>
    %102 = arith.ori %97, %101 : vector<16x128xi1>
    %103 = arith.extui %102 : vector<16x128xi1> to vector<16x128xi32>
    %104 = arith.sitofp %103 : vector<16x128xi32> to vector<16x128xf32>
    %105 = arith.truncf %104 : vector<16x128xf32> to vector<16x128xbf16>
    %c384 = arith.constant 384 : index
    %c0_24 = arith.constant 0 : index
    %106 = vector.load %arg6[%c384, %c0_24] : memref<512x32xbf16, #tpu.memory_space<vmem>>, vector<128x32xbf16>
    %cst_25 = arith.constant dense<0.000000e+00> : vector<16x32xf32>
    %107 = tpu.matmul %105, %106, %cst_25 {dimension_numbers = #tpu.dot_dimension_numbers<[1], [0], [0], [1], [0, 0, 1, 1], [], []>} : vector<16x128xbf16>, vector<128x32xbf16>, vector<16x32xf32> -> vector<16x32xf32>
    %108 = arith.addf %83, %107 : vector<16x32xf32>
    %109 = vector.shape_cast %108 : vector<16x32xf32> to vector<2x8x32xf32>
    %c0_26 = arith.constant 0 : index
    %c0_27 = arith.constant 0 : index
    %110 = vector.load %arg3[%c0_26, %c0_27] : memref<8x32xf32, #tpu.memory_space<vmem>>, vector<8x32xf32>
    %111 = vector.shape_cast %110 : vector<8x32xf32> to vector<1x8x32xf32>
    %112 = vector.broadcast %111 : vector<1x8x32xf32> to vector<2x8x32xf32>
    %113 = arith.addf %109, %112 : vector<2x8x32xf32>
    %c0_28 = arith.constant 0 : index
    %c0_29 = arith.constant 0 : index
    %c0_30 = arith.constant 0 : index
    %114 = vector.load %arg4[%c0_28, %c0_29, %c0_30] : memref<1x2x32xf32, #tpu.memory_space<vmem>>, vector<1x2x32xf32>
    %115 = vector.shape_cast %114 : vector<1x2x32xf32> to vector<2x32xf32>
    %116 = vector.shape_cast %115 : vector<2x32xf32> to vector<2x1x32xf32>
    %117 = vector.broadcast %116 : vector<2x1x32xf32> to vector<2x8x32xf32>
    %118 = arith.addf %113, %117 : vector<2x8x32xf32>
    %c0_31 = arith.constant 0 : index
    %c0_32 = arith.constant 0 : index
    %c0_33 = arith.constant 0 : index
    %119 = vector.load %arg7[%c0_31, %c0_32, %c0_33] : memref<2x8x32xf32, #tpu.memory_space<vmem>>, vector<2x8x32xf32>
    tpu.vector_store %arg7[%c0_31, %c0_32, %c0_33], %118 {strides = array<i32>} : memref<2x8x32xf32, #tpu.memory_space<vmem>>, vector<2x8x32xf32>,
    return
  }
  func.func @transform_0(%arg0: i32) -> (i32, i32) {
    %c0_i32 = arith.constant 0 : i32
    %c0_i32_0 = arith.constant 0 : i32
    return %arg0, %c0_i32 : i32, i32
  }
  func.func @transform_1(%arg0: i32) -> (i32, i32) {
    %c0_i32 = arith.constant 0 : i32
    %c0_i32_0 = arith.constant 0 : i32
    return %arg0, %c0_i32 : i32, i32
  }
  func.func @transform_2(%arg0: i32) -> (i32, i32) {
    %c0_i32 = arith.constant 0 : i32
    %c0_i32_0 = arith.constant 0 : i32
    %c0_i32_1 = arith.constant 0 : i32
    return %c0_i32, %c0_i32_0 : i32, i32
  }
  func.func @transform_3(%arg0: i32) -> (i32, i32, i32) {
    %c0_i32 = arith.constant 0 : i32
    %c0_i32_0 = arith.constant 0 : i32
    %c0_i32_1 = arith.constant 0 : i32
    return %arg0, %c0_i32, %c0_i32_0 : i32, i32, i32
  }
  func.func @transform_4(%arg0: i32) -> (i32, i32) {
    %c0_i32 = arith.constant 0 : i32
    %c0_i32_0 = arith.constant 0 : i32
    %c0_i32_1 = arith.constant 0 : i32
    return %c0_i32, %c0_i32_0 : i32, i32
  }
  func.func @transform_5(%arg0: i32) -> (i32, i32) {
    %c0_i32 = arith.constant 0 : i32
    %c0_i32_0 = arith.constant 0 : i32
    %c0_i32_1 = arith.constant 0 : i32
    return %c0_i32, %c0_i32_0 : i32, i32
  }
  func.func @transform_6(%arg0: i32) -> (i32, i32, i32) {
    %c0_i32 = arith.constant 0 : i32
    %c0_i32_0 = arith.constant 0 : i32
    %c0_i32_1 = arith.constant 0 : i32
    return %arg0, %c0_i32, %c0_i32_0 : i32, i32, i32
  }
}

</mosaic_0001>

<llo_original>
// kernel: tpu_custom_call.1
$region0: #{tpu_custom_call.1}
  #allocation0 [shape = 'u32[]', space=smem, size = 0x4, offset = 0x4, fixed_abs, tag = 'smem constant byte address 0x4 - core index']
  #allocation1 [shape = 'u32[72,128]{1,0:T(1,128)}', space=vmem, size = 0x9000, scoped, tag = 'internal scratch']
  %s0 = inlined_call_operand.vmem [shape: bf16[32,12], index: 0, kind: input, shape index: {}]
  %s1 = inlined_call_operand.vmem [shape: s32[32,4], index: 1, kind: input, shape index: {}]
  %s2 = inlined_call_operand.vmem [shape: f32[8,32], index: 2, kind: input, shape index: {}]
  %s3 = inlined_call_operand.vmem [shape: f32[2,2,32], index: 3, kind: input, shape index: {}]
  %s4 = inlined_call_operand.vmem [shape: bf16[12,32], index: 4, kind: input, shape index: {}]
  %s5 = inlined_call_operand.vmem [shape: bf16[512,32], index: 5, kind: input, shape index: {}]
  %s6 = inlined_call_operand.hbm [shape: f32[4,8,32], index: 6, kind: output, shape index: {}]
  %s7 = sld [smem:[#allocation0]]
  $region57: #{tpu_custom_call.1} parent=0
    _
  %s9 = ssub.s32 1, %s7
  %s10 = scalar_select 0, %s9, %s7
  $region1: #{tpu_custom_call.1} parent=0
    #allocation2 [shape = 'u8[16384]{0}', space=vmem, size = 0x4000, scoped, tag = 'output window, operand 0']
    #allocation3 [shape = 's32[2]{0}', space=sflag, size = 0x8, scoped, tag = 'scoped memory for tpu_custom_call.1']
    %11 = vsyncpa [#allocation3], 0
    %s12 = scalar_lea.sflag [#allocation3], 1
    %13 = vsyncpa %s12, 0
    loop: start=0, step=1, limit=4
    $region2: #{tpu_custom_call.1} parent=1 // loop_pre_header
      _
    $region3: #{tpu_custom_call.1} parent=1 // loop_header
      %s15 = sphi 0, %s19
      %p16 = scmp.ge.s32.totalorder %s15, 4
      %s25 = sphi 0, %s27
      %s28 = sphi 0, %s25
      %s29 = sphi 0, %s28
      %s45 = sphi 0, %s29
      %s51 = sphi 0, %s53
      %s54 = sphi 0, %s51
      %s55 = sphi 0, %s54
      %s71 = sphi 0, %s55
      %s75 = sphi 0, %s75
      %s77 = sphi 0, %s75
      %s78 = sphi 0, %s77
      %s92 = sphi 0, %s78
      %s98 = sphi 0, %s100
      %s101 = sphi 0, %s98
      %s102 = sphi 0, %s101
      %s118 = sphi 0, %s102
      %s122 = sphi 0, %s122
      %s124 = sphi 0, %s122
      %s125 = sphi 0, %s124
      %s139 = sphi 0, %s125
      %s143 = sphi 0, %s143
      %s145 = sphi 0, %s143
      %s146 = sphi 0, %s145
      %s160 = sphi 0, %s146
      %s166 = sphi 0, %s168
      %s169 = sphi 0, %s166
      %s170 = sphi 0, %s169
      %s186 = sphi 0, %s170
    $region4: #{tpu_custom_call.1} parent=1 // loop_header_branch
      %18 = sbr.rel (%p16) target = $region8
    $region5: #{tpu_custom_call.1} parent=1 // loop_body
      %s20 = ssub.s32 %s15, 1
      %s21 = ssub.s32 %s15, 2
      %s22 = sadd.s32 %s15, 1
      %s23 = ssub.s32 %s15, %s22
      %p24 = scmp.eq.s32.totalorder %s23, 0
      %s26 = sadd.s32 %s25, 1
      %s27 = scalar_select %p24, %s25, %s26
      %p30 = pneg %p24
      %p31 = scmp.eq.s32.totalorder %s15, 1
      %p32 = por %p30, %p31
      %p33 = scmp.ne.s32.totalorder %s25, %s28
      %p34 = scmp.eq.s32.totalorder %s15, 0
      %p35 = por %p33, %p34
      %p36 = scmp.ne.s32.totalorder %s25, %s28
      %p37 = scmp.eq.s32.totalorder %s20, 1
      %p38 = por %p36, %p37
      %p39 = scmp.ne.s32.totalorder %s28, %s29
      %p40 = scmp.eq.s32.totalorder %s20, 0
      %p41 = por %p39, %p40
      %p42 = scmp.ne.s32.totalorder %s28, %s29
      %p43 = scmp.eq.s32.totalorder %s21, 1
      %p44 = por %p42, %p43
      %p46 = scmp.ne.s32.totalorder %s29, %s45
      %p47 = scmp.eq.s32.totalorder %s21, 0
      %p48 = por %p46, %p47
      %s49 = ssub.s32 %s15, %s22
      %p50 = scmp.eq.s32.totalorder %s49, 0
      %s52 = sadd.s32 %s51, 1
      %s53 = scalar_select %p50, %s51, %s52
      %p56 = pneg %p50
      %p57 = scmp.eq.s32.totalorder %s15, 1
      %p58 = por %p56, %p57
      %p59 = scmp.ne.s32.totalorder %s51, %s54
      %p60 = scmp.eq.s32.totalorder %s15, 0
      %p61 = por %p59, %p60
      %p62 = scmp.ne.s32.totalorder %s51, %s54
      %p63 = scmp.eq.s32.totalorder %s20, 1
      %p64 = por %p62, %p63
      %p65 = scmp.ne.s32.totalorder %s54, %s55
      %p66 = scmp.eq.s32.totalorder %s20, 0
      %p67 = por %p65, %p66
      %p68 = scmp.ne.s32.totalorder %s54, %s55
      %p69 = scmp.eq.s32.totalorder %s21, 1
      %p70 = por %p68, %p69
      %p72 = scmp.ne.s32.totalorder %s55, %s71
      %p73 = scmp.eq.s32.totalorder %s21, 0
      %p74 = por %p72, %p73
      %s76 = sadd.s32 %s75, 1
      %p79 = scmp.eq.s32.totalorder %s15, 1
      %p80 = scmp.ne.s32.totalorder %s75, %s77
      %p81 = scmp.eq.s32.totalorder %s15, 0
      %p82 = por %p80, %p81
      %p83 = scmp.ne.s32.totalorder %s75, %s77
      %p84 = scmp.eq.s32.totalorder %s20, 1
      %p85 = por %p83, %p84
      %p86 = scmp.ne.s32.totalorder %s77, %s78
      %p87 = scmp.eq.s32.totalorder %s20, 0
      %p88 = por %p86, %p87
      %p89 = scmp.ne.s32.totalorder %s77, %s78
      %p90 = scmp.eq.s32.totalorder %s21, 1
      %p91 = por %p89, %p90
      %p93 = scmp.ne.s32.totalorder %s78, %s92
      %p94 = scmp.eq.s32.totalorder %s21, 0
      %p95 = por %p93, %p94
      %s96 = ssub.s32 %s15, %s22
      %p97 = scmp.eq.s32.totalorder %s96, 0
      %s99 = sadd.s32 %s98, 1
      %s100 = scalar_select %p97, %s98, %s99
      %p103 = pneg %p97
      %p104 = scmp.eq.s32.totalorder %s15, 1
      %p105 = por %p103, %p104
      %p106 = scmp.ne.s32.totalorder %s98, %s101
      %p107 = scmp.eq.s32.totalorder %s15, 0
      %p108 = por %p106, %p107
      %p109 = scmp.ne.s32.totalorder %s98, %s101
      %p110 = scmp.eq.s32.totalorder %s20, 1
      %p111 = por %p109, %p110
      %p112 = scmp.ne.s32.totalorder %s101, %s102
      %p113 = scmp.eq.s32.totalorder %s20, 0
      %p114 = por %p112, %p113
      %p115 = scmp.ne.s32.totalorder %s101, %s102
      %p116 = scmp.eq.s32.totalorder %s21, 1
      %p117 = por %p115, %p116
      %p119 = scmp.ne.s32.totalorder %s102, %s118
      %p120 = scmp.eq.s32.totalorder %s21, 0
      %p121 = por %p119, %p120
      %s123 = sadd.s32 %s122, 1
      %p126 = scmp.eq.s32.totalorder %s15, 1
      %p127 = scmp.ne.s32.totalorder %s122, %s124
      %p128 = scmp.eq.s32.totalorder %s15, 0
      %p129 = por %p127, %p128
      %p130 = scmp.ne.s32.totalorder %s122, %s124
      %p131 = scmp.eq.s32.totalorder %s20, 1
      %p132 = por %p130, %p131
      %p133 = scmp.ne.s32.totalorder %s124, %s125
      %p134 = scmp.eq.s32.totalorder %s20, 0
      %p135 = por %p133, %p134
      %p136 = scmp.ne.s32.totalorder %s124, %s125
      %p137 = scmp.eq.s32.totalorder %s21, 1
      %p138 = por %p136, %p137
      %p140 = scmp.ne.s32.totalorder %s125, %s139
      %p141 = scmp.eq.s32.totalorder %s21, 0
      %p142 = por %p140, %p141
      %s144 = sadd.s32 %s143, 1
      %p147 = scmp.eq.s32.totalorder %s15, 1
      %p148 = scmp.ne.s32.totalorder %s143, %s145
      %p149 = scmp.eq.s32.totalorder %s15, 0
      %p150 = por %p148, %p149
      %p151 = scmp.ne.s32.totalorder %s143, %s145
      %p152 = scmp.eq.s32.totalorder %s20, 1
      %p153 = por %p151, %p152
      %p154 = scmp.ne.s32.totalorder %s145, %s146
      %p155 = scmp.eq.s32.totalorder %s20, 0
      %p156 = por %p154, %p155
      %p157 = scmp.ne.s32.totalorder %s145, %s146
      %p158 = scmp.eq.s32.totalorder %s21, 1
      %p159 = por %p157, %p158
      %p161 = scmp.ne.s32.totalorder %s146, %s160
      %p162 = scmp.eq.s32.totalorder %s21, 0
      %p163 = por %p161, %p162
      %s164 = ssub.s32 %s15, %s22
      %p165 = scmp.eq.s32.totalorder %s164, 0
      %s167 = sadd.s32 %s166, 1
      %s168 = scalar_select %p165, %s166, %s167
      %p171 = pneg %p165
      %p172 = scmp.eq.s32.totalorder %s15, 1
      %p173 = por %p171, %p172
      %p174 = scmp.ne.s32.totalorder %s166, %s169
      %p175 = scmp.eq.s32.totalorder %s15, 0
      %p176 = por %p174, %p175
      %p177 = scmp.ne.s32.totalorder %s166, %s169
      %p178 = scmp.eq.s32.totalorder %s20, 1
      %p179 = por %p177, %p178
      %p180 = scmp.ne.s32.totalorder %s169, %s170
      %p181 = scmp.eq.s32.totalorder %s20, 0
      %p182 = por %p180, %p181
      %p183 = scmp.ne.s32.totalorder %s169, %s170
      %p184 = scmp.eq.s32.totalorder %s21, 1
      %p185 = por %p183, %p184
      %p187 = scmp.ne.s32.totalorder %s170, %s186
      %p188 = scmp.eq.s32.totalorder %s21, 0
      %p189 = por %p187, %p188
      %p190 = scmp.le.s32.totalorder 1, %s15
      %p191 = scmp.lt.s32.totalorder %s15, 3
      %p192 = pnand %p190, %p191
      %p193 = pneg %p192
      // Predicated region
      $region9: #{tpu_custom_call.1} parent=5 // pred_check
        _
      $region10: #{tpu_custom_call.1} parent=5 // pred_check_branch
        %195 = sbr.rel (%p192) target = $region12
      $region11: #{tpu_custom_call.1} parent=5 // pred_region
        %s196 = ssub.s32 %s15, 1
        // Predicated region
        $region13: #{tpu_custom_call.1} parent=11 // pred_check
          %p197 = pneg %p88
        $region14: #{tpu_custom_call.1} parent=11 // pred_check_branch
          %199 = sbr.rel (%p197) target = $region16
        $region15: #{tpu_custom_call.1} parent=11 // pred_region
          _
        $region16: #{tpu_custom_call.1} parent=11 // pred_fallthru
          _
        // Predicated region
        $region17: #{tpu_custom_call.1} parent=11 // pred_check
          %p200 = pneg %p135
        $region18: #{tpu_custom_call.1} parent=11 // pred_check_branch
          %202 = sbr.rel (%p200) target = $region20
        $region19: #{tpu_custom_call.1} parent=11 // pred_region
          _
        $region20: #{tpu_custom_call.1} parent=11 // pred_fallthru
          _
        // Predicated region
        $region21: #{tpu_custom_call.1} parent=11 // pred_check
          %p203 = pneg %p156
        $region22: #{tpu_custom_call.1} parent=11 // pred_check_branch
          %205 = sbr.rel (%p203) target = $region24
        $region23: #{tpu_custom_call.1} parent=11 // pred_region
          _
        $region24: #{tpu_custom_call.1} parent=11 // pred_fallthru
          _
      $region12: #{tpu_custom_call.1} parent=5 // pred_fallthru
        _
      %p206 = scmp.lt.s32.totalorder %s15, 2
      // Predicated region
      $region25: #{tpu_custom_call.1} parent=5 // pred_check
        %p207 = pneg %p206
      $region26: #{tpu_custom_call.1} parent=5 // pred_check_branch
        %209 = sbr.rel (%p207) target = $region28
      $region27: #{tpu_custom_call.1} parent=5 // pred_region
        // Predicated region
        $region29: #{tpu_custom_call.1} parent=27 // pred_check
          %p210 = pneg %p35
        $region30: #{tpu_custom_call.1} parent=27 // pred_check_branch
          %212 = sbr.rel (%p210) target = $region32
        $region31: #{tpu_custom_call.1} parent=27 // pred_region
          %s213 = smul.u32 2, %s15
          %p214 = scmp.lt.s32.totalorder %s213, 3
          %s215 = scalar_select %p214, %s213, 3
          %s216 = smul.addr %s215, 4
          %s217 = scalar_lea.vmem %s0, %s216
          %s218 = smul.u32 2, %s15
        $region32: #{tpu_custom_call.1} parent=27 // pred_fallthru
          _
        // Predicated region
        $region33: #{tpu_custom_call.1} parent=27 // pred_check
          %p219 = pneg %p61
        $region34: #{tpu_custom_call.1} parent=27 // pred_check_branch
          %221 = sbr.rel (%p219) target = $region36
        $region35: #{tpu_custom_call.1} parent=27 // pred_region
          %s222 = smul.u32 2, %s15
          %p223 = scmp.lt.s32.totalorder %s222, 3
          %s224 = scalar_select %p223, %s222, 3
          %s225 = smul.addr %s224, 8
          %s226 = scalar_lea.vmem %s1, %s225
          %s227 = smul.u32 2, %s15
        $region36: #{tpu_custom_call.1} parent=27 // pred_fallthru
          _
        // Predicated region
        $region37: #{tpu_custom_call.1} parent=27 // pred_check
          %p228 = pneg %p108
        $region38: #{tpu_custom_call.1} parent=27 // pred_check_branch
          %230 = sbr.rel (%p228) target = $region40
        $region39: #{tpu_custom_call.1} parent=27 // pred_region
          %p231 = scmp.lt.s32.totalorder %s15, 1
          %s232 = scalar_select %p231, %s15, 1
          %s233 = smul.addr %s232, 2
          %s234 = scalar_lea.vmem %s3, %s233
        $region40: #{tpu_custom_call.1} parent=27 // pred_fallthru
          _
      $region28: #{tpu_custom_call.1} parent=5 // pred_fallthru
        _
      %p235 = scmp.le.s32.totalorder 1, %s15
      %p236 = scmp.lt.s32.totalorder %s15, 3
      %p237 = pnand %p235, %p236
      %p238 = pneg %p237
      // Predicated region
      $region41: #{tpu_custom_call.1} parent=5 // pred_check
        _
      $region42: #{tpu_custom_call.1} parent=5 // pred_check_branch
        %240 = sbr.rel (%p237) target = $region44
      $region43: #{tpu_custom_call.1} parent=5 // pred_region
        %s241 = ssub.s32 %s15, 1
        %s242 = smul.u32 2, %s20
        %p243 = scmp.lt.s32.totalorder %s242, 3
        %s244 = scalar_select %p243, %s242, 3
        %s245 = smul.addr %s244, 4
        %s246 = scalar_lea.vmem %s0, %s245
        %p247 = pneg %p41
        %p248 = pneg %p38
        %s249 = smul.u32 2, %s20
        %p250 = scmp.lt.s32.totalorder %s249, 3
        %s251 = scalar_select %p250, %s249, 3
        %s252 = smul.addr %s251, 8
        %s253 = scalar_lea.vmem %s1, %s252
        %p254 = pneg %p67
        %p255 = pneg %p64
        %p256 = pneg %p88
        %p257 = pneg %p85
        %p258 = scmp.lt.s32.totalorder %s20, 1
        %s259 = scalar_select %p258, %s20, 1
        %s260 = smul.addr %s259, 2
        %s261 = scalar_lea.vmem %s3, %s260
        %p262 = pneg %p114
        %p263 = pneg %p111
        %p264 = pneg %p135
        %p265 = pneg %p132
        %p266 = pneg %p156
        %p267 = pneg %p153
        %p268 = pneg %p182
        %p269 = pneg %p179
        %s270 = sand.u32 %s169, 1
        %s271 = scalar_lea.sflag [#allocation3], %s270
        %s272 = sand.u32 %s169, 1
        %s273 = smul.addr %s272, 16
        %s274 = scalar_lea.vmem [#allocation2], %s273
        %s275 = smul.u32 2, %s20
        %p276 = scmp.lt.s32.totalorder %s275, 3
        %s277 = scalar_select %p276, %s275, 3
        %s278 = smul.addr %s277, 4
        %s279 = scalar_lea.vmem %s0, %s278
        %s280 = smul.u32 2, %s20
        %s281 = smul.u32 2, %s20
        %p282 = scmp.lt.s32.totalorder %s281, 3
        %s283 = scalar_select %p282, %s281, 3
        %s284 = smul.addr %s283, 8
        %s285 = scalar_lea.vmem %s1, %s284
        %s286 = smul.u32 2, %s20
        %p287 = scmp.lt.s32.totalorder %s20, 1
        %s288 = scalar_select %p287, %s20, 1
        %s289 = smul.addr %s288, 2
        %s290 = scalar_lea.vmem %s3, %s289
        %s291 = smul.u32 2, %s20
        %v293 = vld [vmem:[%s279] sm:$0xf]
        %v294 = vld [vmem:[%s279 + $0x4] sm:$0xf]
        %v295 = vld [vmem:[%s4] sm:$0xf]
        %v296 = vld [vmem:[%s4 + $0x4] sm:$0x3]
        %v297 = vld [vmem:[%s285] sm:$0xff]
        %v298 = vld [vmem:[%s285 + $0x8] sm:$0xff]
        %v299 = vlaneseq
        %v300 = vand.u32 %v299, 127
        %301 = vset.pattern.permute.xlu0 0
        %302 = vperm.xlu0 %301, %v297
        %v303 = vpop.permute.xlu0 %302
        %304 = vset.pattern.permute.xlu0 0
        %305 = vperm.xlu0 %304, %v298
        %v306 = vpop.permute.xlu0 %305
        %vm307 = vcmp.eq.s32.totalorder %v300, %v303
        %vm308 = vcmp.eq.s32.totalorder %v300, %v306
        %309 = vset.pattern.permute.xlu0 1
        %310 = vperm.xlu0 %309, %v297
        %v311 = vpop.permute.xlu0 %310
        %312 = vset.pattern.permute.xlu0 1
        %313 = vperm.xlu0 %312, %v298
        %v314 = vpop.permute.xlu0 %313
        %vm315 = vcmp.eq.s32.totalorder %v300, %v311
        %vm316 = vcmp.eq.s32.totalorder %v300, %v314
        %vm317 = vmor %vm307, %vm315
        %vm318 = vmor %vm308, %vm316
        %319 = vset.pattern.permute.xlu0 2
        %320 = vperm.xlu0 %319, %v297
        %v321 = vpop.permute.xlu0 %320
        %322 = vset.pattern.permute.xlu0 2
        %323 = vperm.xlu0 %322, %v298
        %v324 = vpop.permute.xlu0 %323
        %vm325 = vcmp.eq.s32.totalorder %v300, %v321
        %vm326 = vcmp.eq.s32.totalorder %v300, %v324
        %vm327 = vmor %vm317, %vm325
        %vm328 = vmor %vm318, %vm326
        %329 = vset.pattern.permute.xlu0 3
        %330 = vperm.xlu0 %329, %v297
        %v331 = vpop.permute.xlu0 %330
        %332 = vset.pattern.permute.xlu0 3
        %333 = vperm.xlu0 %332, %v298
        %v334 = vpop.permute.xlu0 %333
        %vm335 = vcmp.eq.s32.totalorder %v300, %v331
        %vm336 = vcmp.eq.s32.totalorder %v300, %v334
        %vm337 = vmor %vm327, %vm335
        %vm338 = vmor %vm328, %vm336
        %v339 = vsel %vm337, 1, 0
        %v340 = vsel %vm338, 1, 0
        %v341 = vcvt.s32.f32 %v339
        %v342 = vcvt.s32.f32 %v340
        %v343 = vpack.c.bf16 %v342, %v341
        %v344 = vld [vmem:[%s5] sm:$0xf]
        %v345 = vld [vmem:[%s5 + $0x4] sm:$0xf]
        %v346 = vld [vmem:[%s5 + $0x8] sm:$0xf]
        %v347 = vld [vmem:[%s5 + $0xc] sm:$0xf]
        %v348 = vld [vmem:[%s5 + $0x10] sm:$0xf]
        %v349 = vld [vmem:[%s5 + $0x14] sm:$0xf]
        %v350 = vld [vmem:[%s5 + $0x18] sm:$0xf]
        %v351 = vld [vmem:[%s5 + $0x1c] sm:$0xf]
        %v352 = vld [vmem:[%s5 + $0x20] sm:$0xf]
        %v353 = vld [vmem:[%s5 + $0x24] sm:$0xf]
        %v354 = vld [vmem:[%s5 + $0x28] sm:$0xf]
        %v355 = vld [vmem:[%s5 + $0x2c] sm:$0xf]
        %v356 = vld [vmem:[%s5 + $0x30] sm:$0xf]
        %v357 = vld [vmem:[%s5 + $0x34] sm:$0xf]
        %v358 = vld [vmem:[%s5 + $0x38] sm:$0xf]
        %v359 = vld [vmem:[%s5 + $0x3c] sm:$0xf]
        %v376 = vunpack.c.l.b16 %v344
        %v377 = vunpack.c.l.b16 %v345
        %v378 = vunpack.c.l.b16 %v346
        %v379 = vunpack.c.l.b16 %v347
        %v380 = vunpack.c.l.b16 %v348
        %v381 = vunpack.c.l.b16 %v349
        %v382 = vunpack.c.l.b16 %v350
        %v383 = vunpack.c.l.b16 %v351
        %v384 = vunpack.c.l.b16 %v352
        %v385 = vunpack.c.l.b16 %v353
        %v386 = vunpack.c.l.b16 %v354
        %v387 = vunpack.c.l.b16 %v355
        %v388 = vunpack.c.l.b16 %v356
        %v389 = vunpack.c.l.b16 %v357
        %v390 = vunpack.c.l.b16 %v358
        %v391 = vunpack.c.l.b16 %v359
        %v392 = vpack.c.b16 %v377, %v376
        %v393 = vpack.c.b16 %v379, %v378
        %v394 = vpack.c.b16 %v381, %v380
        %v395 = vpack.c.b16 %v383, %v382
        %v396 = vpack.c.b16 %v385, %v384
        %v397 = vpack.c.b16 %v387, %v386
        %v398 = vpack.c.b16 %v389, %v388
        %v399 = vpack.c.b16 %v391, %v390
        %408 = vmatpush.bf16.msra.mxu0 %v399
        %409 = vmatpush.bf16.msra.mxu0 %v398
        %410 = vmatpush.bf16.msra.mxu0 %v397
        %411 = vmatpush.bf16.msra.mxu0 %v396
        %412 = vmatpush.bf16.msra.mxu0 %v395
        %413 = vmatpush.bf16.msra.mxu0 %v394
        %414 = vmatpush.bf16.msra.mxu0 %v393
        %415 = vmatpush.bf16.msra.mxu0 %v392
        %416 = vmatmul.bf16.gmra.mxu0 %v343
        %v417 = vpop.f32.mrf.mxu0
        %v418 = vadd.f32 0.0, %v417
        %v419 = vpop.f32.mrf.mxu0
        %v420 = vadd.f32 0.0, %v419
        %421 = vdwg.mxu0
        %v424 = vunpack.c.l.b16 %v293
        %v425 = vunpack.c.l.b16 %v294
        %v426 = vpack.c.b16 %v425, %v424
        %v429 = vunpack.c.l.b16 %v295
        %v430 = vunpack.c.l.b16 %v296
        %v431 = vpack.c.b16 %v430, %v429
        %vm432 = vcmask 97280
        %v434 = vsel %vm432, %v426, 0
        %vm436 = vcmask 1045504
        %v438 = vsel %vm436, %v431, 0
        %440 = vmatpush.bf16.msra.mxu0 0
        %441 = vmatpush.bf16.msra.mxu0 0
        %442 = vmatpush.bf16.msra.mxu0 0
        %443 = vmatpush.bf16.msra.mxu0 0
        %444 = vmatpush.bf16.msra.mxu0 0
        %445 = vmatpush.bf16.msra.mxu0 0
        %446 = vmatpush.bf16.msra.mxu0 0
        %447 = vmatpush.bf16.msra.mxu0 %v438
        %448 = vmatmul.bf16.gmra.mxu0 %v434
        %v449 = vpop.f32.mrf.mxu0
        %v450 = vadd.f32 %v418, %v449
        %v451 = vpop.f32.mrf.mxu0
        %v452 = vadd.f32 %v420, %v451
        %453 = vdwg.mxu0
        %v454 = vsub.s32 %v297, 128
        %v455 = vsub.s32 %v298, 128
        %456 = vset.pattern.permute.xlu0 0
        %457 = vperm.xlu0 %456, %v454
        %v458 = vpop.permute.xlu0 %457
        %459 = vset.pattern.permute.xlu0 0
        %460 = vperm.xlu0 %459, %v455
        %v461 = vpop.permute.xlu0 %460
        %vm462 = vcmp.eq.s32.totalorder %v300, %v458
        %vm463 = vcmp.eq.s32.totalorder %v300, %v461
        %464 = vset.pattern.permute.xlu0 1
        %465 = vperm.xlu0 %464, %v454
        %v466 = vpop.permute.xlu0 %465
        %467 = vset.pattern.permute.xlu0 1
        %468 = vperm.xlu0 %467, %v455
        %v469 = vpop.permute.xlu0 %468
        %vm470 = vcmp.eq.s32.totalorder %v300, %v466
        %vm471 = vcmp.eq.s32.totalorder %v300, %v469
        %vm472 = vmor %vm462, %vm470
        %vm473 = vmor %vm463, %vm471
        %474 = vset.pattern.permute.xlu0 2
        %475 = vperm.xlu0 %474, %v454
        %v476 = vpop.permute.xlu0 %475
        %477 = vset.pattern.permute.xlu0 2
        %478 = vperm.xlu0 %477, %v455
        %v479 = vpop.permute.xlu0 %478
        %vm480 = vcmp.eq.s32.totalorder %v300, %v476
        %vm481 = vcmp.eq.s32.totalorder %v300, %v479
        %vm482 = vmor %vm472, %vm480
        %vm483 = vmor %vm473, %vm481
        %484 = vset.pattern.permute.xlu0 3
        %485 = vperm.xlu0 %484, %v454
        %v486 = vpop.permute.xlu0 %485
        %487 = vset.pattern.permute.xlu0 3
        %488 = vperm.xlu0 %487, %v455
        %v489 = vpop.permute.xlu0 %488
        %vm490 = vcmp.eq.s32.totalorder %v300, %v486
        %vm491 = vcmp.eq.s32.totalorder %v300, %v489
        %vm492 = vmor %vm482, %vm490
        %vm493 = vmor %vm483, %vm491
        %v494 = vsel %vm492, 1, 0
        %v495 = vsel %vm493, 1, 0
        %v496 = vcvt.s32.f32 %v494
        %v497 = vcvt.s32.f32 %v495
        %v498 = vpack.c.bf16 %v497, %v496
        %v499 = vld [vmem:[%s5 + $0x40] sm:$0xf]
        %v500 = vld [vmem:[%s5 + $0x44] sm:$0xf]
        %v501 = vld [vmem:[%s5 + $0x48] sm:$0xf]
        %v502 = vld [vmem:[%s5 + $0x4c] sm:$0xf]
        %v503 = vld [vmem:[%s5 + $0x50] sm:$0xf]
        %v504 = vld [vmem:[%s5 + $0x54] sm:$0xf]
        %v505 = vld [vmem:[%s5 + $0x58] sm:$0xf]
        %v506 = vld [vmem:[%s5 + $0x5c] sm:$0xf]
        %v507 = vld [vmem:[%s5 + $0x60] sm:$0xf]
        %v508 = vld [vmem:[%s5 + $0x64] sm:$0xf]
        %v509 = vld [vmem:[%s5 + $0x68] sm:$0xf]
        %v510 = vld [vmem:[%s5 + $0x6c] sm:$0xf]
        %v511 = vld [vmem:[%s5 + $0x70] sm:$0xf]
        %v512 = vld [vmem:[%s5 + $0x74] sm:$0xf]
        %v513 = vld [vmem:[%s5 + $0x78] sm:$0xf]
        %v514 = vld [vmem:[%s5 + $0x7c] sm:$0xf]
        %v531 = vunpack.c.l.b16 %v499
        %v532 = vunpack.c.l.b16 %v500
        %v533 = vunpack.c.l.b16 %v501
        %v534 = vunpack.c.l.b16 %v502
        %v535 = vunpack.c.l.b16 %v503
        %v536 = vunpack.c.l.b16 %v504
        %v537 = vunpack.c.l.b16 %v505
        %v538 = vunpack.c.l.b16 %v506
        %v539 = vunpack.c.l.b16 %v507
        %v540 = vunpack.c.l.b16 %v508
        %v541 = vunpack.c.l.b16 %v509
        %v542 = vunpack.c.l.b16 %v510
        %v543 = vunpack.c.l.b16 %v511
        %v544 = vunpack.c.l.b16 %v512
        %v545 = vunpack.c.l.b16 %v513
        %v546 = vunpack.c.l.b16 %v514
        %v547 = vpack.c.b16 %v532, %v531
        %v548 = vpack.c.b16 %v534, %v533
        %v549 = vpack.c.b16 %v536, %v535
        %v550 = vpack.c.b16 %v538, %v537
        %v551 = vpack.c.b16 %v540, %v539
        %v552 = vpack.c.b16 %v542, %v541
        %v553 = vpack.c.b16 %v544, %v543
        %v554 = vpack.c.b16 %v546, %v545
        %563 = vmatpush.bf16.msra.mxu0 %v554
        %564 = vmatpush.bf16.msra.mxu0 %v553
        %565 = vmatpush.bf16.msra.mxu0 %v552
        %566 = vmatpush.bf16.msra.mxu0 %v551
        %567 = vmatpush.bf16.msra.mxu0 %v550
        %568 = vmatpush.bf16.msra.mxu0 %v549
        %569 = vmatpush.bf16.msra.mxu0 %v548
        %570 = vmatpush.bf16.msra.mxu0 %v547
        %571 = vmatmul.bf16.gmra.mxu0 %v498
        %v572 = vpop.f32.mrf.mxu0
        %v573 = vadd.f32 0.0, %v572
        %v574 = vpop.f32.mrf.mxu0
        %v575 = vadd.f32 0.0, %v574
        %576 = vdwg.mxu0
        %v577 = vadd.f32 %v450, %v573
        %v578 = vadd.f32 %v452, %v575
        %v579 = vsub.s32 %v297, 256
        %v580 = vsub.s32 %v298, 256
        %581 = vset.pattern.permute.xlu0 0
        %582 = vperm.xlu0 %581, %v579
        %v583 = vpop.permute.xlu0 %582
        %584 = vset.pattern.permute.xlu0 0
        %585 = vperm.xlu0 %584, %v580
        %v586 = vpop.permute.xlu0 %585
        %vm587 = vcmp.eq.s32.totalorder %v300, %v583
        %vm588 = vcmp.eq.s32.totalorder %v300, %v586
        %589 = vset.pattern.permute.xlu0 1
        %590 = vperm.xlu0 %589, %v579
        %v591 = vpop.permute.xlu0 %590
        %592 = vset.pattern.permute.xlu0 1
        %593 = vperm.xlu0 %592, %v580
        %v594 = vpop.permute.xlu0 %593
        %vm595 = vcmp.eq.s32.totalorder %v300, %v591
        %vm596 = vcmp.eq.s32.totalorder %v300, %v594
        %vm597 = vmor %vm587, %vm595
        %vm598 = vmor %vm588, %vm596
        %599 = vset.pattern.permute.xlu0 2
        %600 = vperm.xlu0 %599, %v579
        %v601 = vpop.permute.xlu0 %600
        %602 = vset.pattern.permute.xlu0 2
        %603 = vperm.xlu0 %602, %v580
        %v604 = vpop.permute.xlu0 %603
        %vm605 = vcmp.eq.s32.totalorder %v300, %v601
        %vm606 = vcmp.eq.s32.totalorder %v300, %v604
        %vm607 = vmor %vm597, %vm605
        %vm608 = vmor %vm598, %vm606
        %609 = vset.pattern.permute.xlu0 3
        %610 = vperm.xlu0 %609, %v579
        %v611 = vpop.permute.xlu0 %610
        %612 = vset.pattern.permute.xlu0 3
        %613 = vperm.xlu0 %612, %v580
        %v614 = vpop.permute.xlu0 %613
        %vm615 = vcmp.eq.s32.totalorder %v300, %v611
        %vm616 = vcmp.eq.s32.totalorder %v300, %v614
        %vm617 = vmor %vm607, %vm615
        %vm618 = vmor %vm608, %vm616
        %v619 = vsel %vm617, 1, 0
        %v620 = vsel %vm618, 1, 0
        %v621 = vcvt.s32.f32 %v619
        %v622 = vcvt.s32.f32 %v620
        %v623 = vpack.c.bf16 %v622, %v621
        %v624 = vld [vmem:[%s5 + $0x80] sm:$0xf]
        %v625 = vld [vmem:[%s5 + $0x84] sm:$0xf]
        %v626 = vld [vmem:[%s5 + $0x88] sm:$0xf]
        %v627 = vld [vmem:[%s5 + $0x8c] sm:$0xf]
        %v628 = vld [vmem:[%s5 + $0x90] sm:$0xf]
        %v629 = vld [vmem:[%s5 + $0x94] sm:$0xf]
        %v630 = vld [vmem:[%s5 + $0x98] sm:$0xf]
        %v631 = vld [vmem:[%s5 + $0x9c] sm:$0xf]
        %v632 = vld [vmem:[%s5 + $0xa0] sm:$0xf]
        %v633 = vld [vmem:[%s5 + $0xa4] sm:$0xf]
        %v634 = vld [vmem:[%s5 + $0xa8] sm:$0xf]
        %v635 = vld [vmem:[%s5 + $0xac] sm:$0xf]
        %v636 = vld [vmem:[%s5 + $0xb0] sm:$0xf]
        %v637 = vld [vmem:[%s5 + $0xb4] sm:$0xf]
        %v638 = vld [vmem:[%s5 + $0xb8] sm:$0xf]
        %v639 = vld [vmem:[%s5 + $0xbc] sm:$0xf]
        %v656 = vunpack.c.l.b16 %v624
        %v657 = vunpack.c.l.b16 %v625
        %v658 = vunpack.c.l.b16 %v626
        %v659 = vunpack.c.l.b16 %v627
        %v660 = vunpack.c.l.b16 %v628
        %v661 = vunpack.c.l.b16 %v629
        %v662 = vunpack.c.l.b16 %v630
        %v663 = vunpack.c.l.b16 %v631
        %v664 = vunpack.c.l.b16 %v632
        %v665 = vunpack.c.l.b16 %v633
        %v666 = vunpack.c.l.b16 %v634
        %v667 = vunpack.c.l.b16 %v635
        %v668 = vunpack.c.l.b16 %v636
        %v669 = vunpack.c.l.b16 %v637
        %v670 = vunpack.c.l.b16 %v638
        %v671 = vunpack.c.l.b16 %v639
        %v672 = vpack.c.b16 %v657, %v656
        %v673 = vpack.c.b16 %v659, %v658
        %v674 = vpack.c.b16 %v661, %v660
        %v675 = vpack.c.b16 %v663, %v662
        %v676 = vpack.c.b16 %v665, %v664
        %v677 = vpack.c.b16 %v667, %v666
        %v678 = vpack.c.b16 %v669, %v668
        %v679 = vpack.c.b16 %v671, %v670
        %688 = vmatpush.bf16.msra.mxu0 %v679
        %689 = vmatpush.bf16.msra.mxu0 %v678
        %690 = vmatpush.bf16.msra.mxu0 %v677
        %691 = vmatpush.bf16.msra.mxu0 %v676
        %692 = vmatpush.bf16.msra.mxu0 %v675
        %693 = vmatpush.bf16.msra.mxu0 %v674
        %694 = vmatpush.bf16.msra.mxu0 %v673
        %695 = vmatpush.bf16.msra.mxu0 %v672
        %696 = vmatmul.bf16.gmra.mxu0 %v623
        %v697 = vpop.f32.mrf.mxu0
        %v698 = vadd.f32 0.0, %v697
        %v699 = vpop.f32.mrf.mxu0
        %v700 = vadd.f32 0.0, %v699
        %701 = vdwg.mxu0
        %v702 = vadd.f32 %v577, %v698
        %v703 = vadd.f32 %v578, %v700
        %v704 = vsub.s32 %v297, 384
        %v705 = vsub.s32 %v298, 384
        %706 = vset.pattern.permute.xlu0 0
        %707 = vperm.xlu0 %706, %v704
        %v708 = vpop.permute.xlu0 %707
        %709 = vset.pattern.permute.xlu0 0
        %710 = vperm.xlu0 %709, %v705
        %v711 = vpop.permute.xlu0 %710
        %vm712 = vcmp.eq.s32.totalorder %v300, %v708
        %vm713 = vcmp.eq.s32.totalorder %v300, %v711
        %714 = vset.pattern.permute.xlu0 1
        %715 = vperm.xlu0 %714, %v704
        %v716 = vpop.permute.xlu0 %715
        %717 = vset.pattern.permute.xlu0 1
        %718 = vperm.xlu0 %717, %v705
        %v719 = vpop.permute.xlu0 %718
        %vm720 = vcmp.eq.s32.totalorder %v300, %v716
        %vm721 = vcmp.eq.s32.totalorder %v300, %v719
        %vm722 = vmor %vm712, %vm720
        %vm723 = vmor %vm713, %vm721
        %724 = vset.pattern.permute.xlu0 2
        %725 = vperm.xlu0 %724, %v704
        %v726 = vpop.permute.xlu0 %725
        %727 = vset.pattern.permute.xlu0 2
        %728 = vperm.xlu0 %727, %v705
        %v729 = vpop.permute.xlu0 %728
        %vm730 = vcmp.eq.s32.totalorder %v300, %v726
        %vm731 = vcmp.eq.s32.totalorder %v300, %v729
        %vm732 = vmor %vm722, %vm730
        %vm733 = vmor %vm723, %vm731
        %734 = vset.pattern.permute.xlu0 3
        %735 = vperm.xlu0 %734, %v704
        %v736 = vpop.permute.xlu0 %735
        %737 = vset.pattern.permute.xlu0 3
        %738 = vperm.xlu0 %737, %v705
        %v739 = vpop.permute.xlu0 %738
        %vm740 = vcmp.eq.s32.totalorder %v300, %v736
        %vm741 = vcmp.eq.s32.totalorder %v300, %v739
        %vm742 = vmor %vm732, %vm740
        %vm743 = vmor %vm733, %vm741
        %v744 = vsel %vm742, 1, 0
        %v745 = vsel %vm743, 1, 0
        %v746 = vcvt.s32.f32 %v744
        %v747 = vcvt.s32.f32 %v745
        %v748 = vpack.c.bf16 %v747, %v746
        %v749 = vld [vmem:[%s5 + $0xc0] sm:$0xf]
        %v750 = vld [vmem:[%s5 + $0xc4] sm:$0xf]
        %v751 = vld [vmem:[%s5 + $0xc8] sm:$0xf]
        %v752 = vld [vmem:[%s5 + $0xcc] sm:$0xf]
        %v753 = vld [vmem:[%s5 + $0xd0] sm:$0xf]
        %v754 = vld [vmem:[%s5 + $0xd4] sm:$0xf]
        %v755 = vld [vmem:[%s5 + $0xd8] sm:$0xf]
        %v756 = vld [vmem:[%s5 + $0xdc] sm:$0xf]
        %v757 = vld [vmem:[%s5 + $0xe0] sm:$0xf]
        %v758 = vld [vmem:[%s5 + $0xe4] sm:$0xf]
        %v759 = vld [vmem:[%s5 + $0xe8] sm:$0xf]
        %v760 = vld [vmem:[%s5 + $0xec] sm:$0xf]
        %v761 = vld [vmem:[%s5 + $0xf0] sm:$0xf]
        %v762 = vld [vmem:[%s5 + $0xf4] sm:$0xf]
        %v763 = vld [vmem:[%s5 + $0xf8] sm:$0xf]
        %v764 = vld [vmem:[%s5 + $0xfc] sm:$0xf]
        %v781 = vunpack.c.l.b16 %v749
        %v782 = vunpack.c.l.b16 %v750
        %v783 = vunpack.c.l.b16 %v751
        %v784 = vunpack.c.l.b16 %v752
        %v785 = vunpack.c.l.b16 %v753
        %v786 = vunpack.c.l.b16 %v754
        %v787 = vunpack.c.l.b16 %v755
        %v788 = vunpack.c.l.b16 %v756
        %v789 = vunpack.c.l.b16 %v757
        %v790 = vunpack.c.l.b16 %v758
        %v791 = vunpack.c.l.b16 %v759
        %v792 = vunpack.c.l.b16 %v760
        %v793 = vunpack.c.l.b16 %v761
        %v794 = vunpack.c.l.b16 %v762
        %v795 = vunpack.c.l.b16 %v763
        %v796 = vunpack.c.l.b16 %v764
        %v797 = vpack.c.b16 %v782, %v781
        %v798 = vpack.c.b16 %v784, %v783
        %v799 = vpack.c.b16 %v786, %v785
        %v800 = vpack.c.b16 %v788, %v787
        %v801 = vpack.c.b16 %v790, %v789
        %v802 = vpack.c.b16 %v792, %v791
        %v803 = vpack.c.b16 %v794, %v793
        %v804 = vpack.c.b16 %v796, %v795
        %813 = vmatpush.bf16.msra.mxu0 %v804
        %814 = vmatpush.bf16.msra.mxu0 %v803
        %815 = vmatpush.bf16.msra.mxu0 %v802
        %816 = vmatpush.bf16.msra.mxu0 %v801
        %817 = vmatpush.bf16.msra.mxu0 %v800
        %818 = vmatpush.bf16.msra.mxu0 %v799
        %819 = vmatpush.bf16.msra.mxu0 %v798
        %820 = vmatpush.bf16.msra.mxu0 %v797
        %821 = vmatmul.bf16.gmra.mxu0 %v748
        %v822 = vpop.f32.mrf.mxu0
        %v823 = vadd.f32 0.0, %v822
        %v824 = vpop.f32.mrf.mxu0
        %v825 = vadd.f32 0.0, %v824
        %826 = vdwg.mxu0
        %v827 = vadd.f32 %v702, %v823
        %v828 = vadd.f32 %v703, %v825
        %v829 = vld [vmem:[%s2] sm:$0xff]
        %v830 = vadd.f32 %v827, %v829
        %v831 = vadd.f32 %v828, %v829
        %v832 = vld [vmem:[%s290] sm:$0x3]
        %v834 = vrot.slane %v832, 1
        %v835 = vperm.slane %v832, 0
        %v836 = vperm.slane %v834, 0
        %v839 = vadd.f32 %v830, %v835
        %v840 = vadd.f32 %v831, %v836
        %vm841 = vcmask 261120
        %842 = vst.msk [vmem:[%s274] sm:$0xff] %vm841, %v839
        %843 = vst.msk [vmem:[%s274 + $0x8] sm:$0xff] %vm841, %v840
        %s844 = sand.u32 %s169, 1
        %s845 = scalar_lea.sflag [#allocation3], %s844
        %s846 = sand.u32 %s169, 1
        %s847 = smul.addr %s846, 16
        %s848 = scalar_lea.vmem [#allocation2], %s847
        // Predicated region
        $region45: #{tpu_custom_call.1} parent=43 // pred_check
          %p849 = pneg %p179
        $region46: #{tpu_custom_call.1} parent=43 // pred_check_branch
          %851 = sbr.rel (%p849) target = $region48
        $region47: #{tpu_custom_call.1} parent=43 // pred_region
          %s852 = smul.u32 2, %s20
          %854 = vsyncadd %s845, 0
          %s855 = smul.addr %s852, 8
          %s856 = scalar_lea.hbm %s6, %s855
          %s857 = sshll.u32 %s848, 4
          %s858 = int_to_ptr.vmem [resolvable:$true] %s857
          %s859 = sshll.u32 %s856, 4
          %s860 = int_to_ptr.hbm [resolvable:$true] %s859
          %865 = dma.vmem_to_hbm [thread:$0]  %s858, 256, %s860, %s845, 128, 128, 8
        $region48: #{tpu_custom_call.1} parent=43 // pred_fallthru
          _
      $region44: #{tpu_custom_call.1} parent=5 // pred_fallthru
        _
      %p866 = scmp.le.s32.totalorder 2, %s15
      // Predicated region
      $region49: #{tpu_custom_call.1} parent=5 // pred_check
        %p867 = pneg %p866
      $region50: #{tpu_custom_call.1} parent=5 // pred_check_branch
        %869 = sbr.rel (%p867) target = $region52
      $region51: #{tpu_custom_call.1} parent=5 // pred_region
        %s870 = ssub.s32 %s15, 2
        // Predicated region
        $region53: #{tpu_custom_call.1} parent=51 // pred_check
          %p871 = pneg %p185
        $region54: #{tpu_custom_call.1} parent=51 // pred_check_branch
          %873 = sbr.rel (%p871) target = $region56
        $region55: #{tpu_custom_call.1} parent=51 // pred_region
          %s874 = sand.u32 %s170, 1
          %s875 = scalar_lea.sflag [#allocation3], %s874
          %s876 = sand.u32 %s170, 1
          %s877 = smul.addr %s876, 16
          %s878 = scalar_lea.vmem [#allocation2], %s877
          %880 = dma.done %s875, 256
        $region56: #{tpu_custom_call.1} parent=51 // pred_fallthru
          _
      $region52: #{tpu_custom_call.1} parent=5 // pred_fallthru
        _
    $region6: #{tpu_custom_call.1} parent=1 // loop_footer
      %s19 = sadd.s32 1, %s15
    $region7: #{tpu_custom_call.1} parent=1 // loop_footer_branch
      %14 = sbr.rel target = $region3
    $region8: #{tpu_custom_call.1} parent=1 // loop_exit
      _
    %881 = vsyncpa [#allocation3], 1
    %s882 = scalar_lea.sflag [#allocation3], 1
    %883 = vsyncpa %s882, 1

</llo_original>
